<compile_context>
chip_gen: v6e
topology: v6e:2x2x1
jax: 0.10.0
libtpu: 0.0.40
codegen_flags: <defaults>
</compile_context>

<pallas_src>
import functools

import jax
import jax.numpy as jnp
from jax import lax
from jax.experimental import pallas as pl
from jax.experimental.pallas import tpu as pltpu


def _round_up(x, m):
    return ((x + m - 1) // m) * m


def _choose_block_b(batch, num_classes, in_dtype):
    """Pick the batch tile size and the scoped-VMEM limit.

    Footprint per row of tile: 2x the input (double-buffered DMA) plus ~4 live
    (tb, Cp) f32 temporaries (cast, shifted, exp, weighted), where Cp is the
    lane-padded class width actually occupied in VMEM.
    """
    itemsize = jnp.dtype(in_dtype).itemsize
    sublane = max(8, 32 // max(itemsize, 1))          # 8 f32, 16 bf16, 32 int8/fp8
    c_pad = _round_up(max(num_classes, 128), 128)     # lanes occupied in VMEM

    try:
        vmem_cap = int(pltpu.get_tpu_info().vmem_capacity_bytes)
    except Exception:                                  # pragma: no cover
        vmem_cap = 64 * 1024 * 1024                    # safe for every generation
    # v5e/v6e (128 MiB) -> 64 MiB scoped; v7x (64 MiB/TC) -> 32 MiB scoped.
    vmem_limit = min(64 * 1024 * 1024, vmem_cap // 2)

    bytes_per_row = c_pad * (2 * itemsize + 4 * 4)
    budget = int(vmem_limit * 0.75)                    # headroom for compiler scratch
    tb = budget // bytes_per_row
    tb = max(sublane, min(1024, tb))
    tb = (tb // sublane) * sublane
    tb = min(tb, _round_up(batch, sublane))
    return int(tb), int(vmem_limit)


def _make_kernel(num_classes, batch, epsilon, block_b):
    """Kernel closure over the static config (no SMEM scalars needed)."""
    inv_b = 1.0 / float(batch)
    eps_over_c = float(epsilon) / float(num_classes)
    w_hit = 1.0 - float(epsilon) + eps_over_c          # weight at c == target
    ragged = (batch % block_b) != 0                    # partial last batch tile?

    def kernel(logits_ref, targets_ref, out_ref):
        x = logits_ref[...].astype(jnp.float32)        # (TB, C) logical (no lane pad)
        tb, c = x.shape

        # numerically stable log-sum-exp over the real (logical) classes
        m = jnp.max(x, axis=1, keepdims=True)           # (TB, 1)
        shifted = x - m                                  # (TB, C)
        sum_exp = jnp.sum(jnp.exp(shifted), axis=1, keepdims=True)
        lse = jnp.log(sum_exp)                           # (TB, 1)

        # fused smoothed weights: one compare + one select, one lane reduce
        class_ids = lax.broadcasted_iota(jnp.int32, (1, c), 1)
        w = jnp.where(class_ids == targets_ref[...],     # broadcast (TB, C)
                      jnp.float32(w_hit), jnp.float32(eps_over_c))
        weighted = jnp.sum(w * shifted, axis=1, keepdims=True)   # (TB, 1)

        # sum_c w_c == 1, so  per_row = -sum_c w_c*(shifted - lse) = lse - weighted
        per_row = lse - weighted                         # (TB, 1)

        if ragged:
            # mask garbage rows of the partial last tile (block origin is i*TB)
            i = pl.program_id(0)
            row_ids = i * block_b + lax.broadcasted_iota(jnp.int32, (tb, 1), 0)
            per_row = jnp.where(row_ids < batch, per_row, 0.0)

        partial = jnp.sum(per_row) * inv_b
        out_ref[...] = jnp.full(out_ref.shape, partial, dtype=jnp.float32)

    return kernel


@functools.partial(jax.jit, static_argnames=("num_classes", "epsilon", "block_b"))
def cross_entropy_label_smooth(inputs, targets, num_classes, epsilon, block_b=None):
    """inputs: (B, num_classes) float logits (any float dtype);
    targets: (B,) int class ids. Returns scalar f32 loss."""
    B, C = inputs.shape
    assert C == num_classes

    tb, vmem_limit = _choose_block_b(B, C, inputs.dtype)
    if block_b is not None:                              # test/tuning override
        tb = max(8, (int(block_b) // 8) * 8)
    num_tiles = (B + tb - 1) // tb

    t = targets.astype(jnp.int32).reshape(B, 1)          # tiny; keeps (tb,1) block legal
    kernel = _make_kernel(C, B, float(epsilon), tb)

    out = pl.pallas_call(
        kernel,
        out_shape=jax.ShapeDtypeStruct((num_tiles, 8, 128), jnp.float32),
        grid=(num_tiles,),
        in_specs=[
            # class block dim == full array dim C -> legal for any C, no pad copy
            pl.BlockSpec((tb, C), lambda i: (i, 0)),      # logits tile
            pl.BlockSpec((tb, 1), lambda i: (i, 0)),      # targets tile
        ],
        out_specs=pl.BlockSpec((1, 8, 128), lambda i: (i, 0, 0)),
        compiler_params=pltpu.CompilerParams(
            dimension_semantics=("parallel",),
            vmem_limit_bytes=vmem_limit,
        ),
    )(inputs, t)

    # reduce per-tile partial sums (tiny) in the wrapper
    return jnp.sum(out[:, 0, 0])


def _reference(inputs, targets, num_classes, epsilon):
    log_probs = jax.nn.log_softmax(inputs.astype(jnp.float32), axis=1)
    one_hot = jax.nn.one_hot(targets, num_classes, dtype=jnp.float32)
    smoothed = (1.0 - epsilon) * one_hot + epsilon / num_classes
    return jnp.sum(jnp.mean(-smoothed * log_probs, axis=0))


if __name__ == "__main__":
    key = jax.random.PRNGKey(0)
    epsilon = 0.1

    # (batch, num_classes, forced block_b):
    #   (8, 32, None)   -> C < 128 lanes, exact batch tile
    #   (10, 1000, None)-> non-128-multiple C + ragged (partial) batch tile
    #   (40, 256, 16)   -> multi-tile grid with a partial last tile
    for (B, C, bb) in [(8, 32, None), (10, 1000, None), (40, 256, 16)]:
        k1, k2 = jax.random.split(jax.random.fold_in(key, B * 100003 + C))
        logits = jax.random.normal(k1, (B, C), dtype=jnp.float32)
        targets = jax.random.randint(k2, (B,), 0, C, dtype=jnp.int32)

        loss = cross_entropy_label_smooth(
            logits, targets, num_classes=C, epsilon=epsilon, block_b=bb)
        loss = jax.block_until_ready(loss)

        ref = _reference(logits, targets, C, epsilon)
        assert jnp.allclose(loss, ref, atol=1e-5, rtol=1e-5), (B, C, float(loss), float(ref))

    print("KERNEL_OK")
</pallas_src>

<mosaic_0001>
module attributes {stable_mosaic.version = 11 : i64} {
  func.func @kernel(%arg0: i32, %arg1: memref<8x32xf32, #tpu.memory_space<vmem>>, %arg2: memref<8x1xi32, #tpu.memory_space<vmem>>, %arg3: memref<1x8x128xf32, #tpu.memory_space<vmem>>) attributes {dimension_semantics = [#tpu.dimension_semantics<parallel>], iteration_bounds = array<i64: 1>, scalar_prefetch = 0 : i64, scratch_operands = 0 : i64, tpu.core_type = #tpu.core_type<tc>, window_params = [{transform_indices = @transform_0, window_bounds = array<i64: 8, 32>}, {transform_indices = @transform_1, window_bounds = array<i64: 8, 1>}, {transform_indices = @transform_2, window_bounds = array<i64: 1, 8, 128>}]} {
    %c0 = arith.constant 0 : index
    %c0_0 = arith.constant 0 : index
    %0 = vector.load %arg1[%c0, %c0_0] : memref<8x32xf32, #tpu.memory_space<vmem>>, vector<8x32xf32>
    %cst = arith.constant dense<0xFF800000> : vector<8xf32>
    %1 = vector.multi_reduction <maximumf>, %0, %cst [1] : vector<8x32xf32> to vector<8xf32>
    %2 = vector.shape_cast %1 : vector<8xf32> to vector<8x1xf32>
    %3 = vector.broadcast %2 : vector<8x1xf32> to vector<8x32xf32>
    %4 = arith.subf %0, %3 : vector<8x32xf32>
    %5 = math.exp %4 : vector<8x32xf32>
    %cst_1 = arith.constant dense<0.000000e+00> : vector<8xf32>
    %6 = vector.multi_reduction <add>, %5, %cst_1 [1] : vector<8x32xf32> to vector<8xf32>
    %7 = vector.shape_cast %6 : vector<8xf32> to vector<8x1xf32>
    %8 = math.log %7 : vector<8x1xf32>
    %9 = tpu.iota {dimensions = array<i32: 1>} : vector<1x32xi32>
    %c0_2 = arith.constant 0 : index
    %c0_3 = arith.constant 0 : index
    %10 = vector.load %arg2[%c0_2, %c0_3] : memref<8x1xi32, #tpu.memory_space<vmem>>, vector<8x1xi32>
    %11 = vector.broadcast %9 : vector<1x32xi32> to vector<8x32xi32>
    %12 = vector.broadcast %10 : vector<8x1xi32> to vector<8x32xi32>
    %13 = arith.cmpi eq, %11, %12 : vector<8x32xi32>
    %cst_4 = arith.constant 0.903124988 : f32
    %cst_5 = arith.constant 3.125000e-03 : f32
    %14 = vector.broadcast %cst_4 : f32 to vector<8x32xf32>
    %15 = vector.broadcast %cst_5 : f32 to vector<8x32xf32>
    %16 = arith.select %13, %14, %15 : vector<8x32xi1>, vector<8x32xf32>
    %17 = arith.mulf %16, %4 : vector<8x32xf32>
    %cst_6 = arith.constant dense<0.000000e+00> : vector<8xf32>
    %18 = vector.multi_reduction <add>, %17, %cst_6 [1] : vector<8x32xf32> to vector<8xf32>
    %19 = vector.shape_cast %18 : vector<8xf32> to vector<8x1xf32>
    %20 = arith.subf %8, %19 : vector<8x1xf32>
    %21 = vector.shape_cast %20 : vector<8x1xf32> to vector<1x8x1xf32>
    %cst_7 = arith.constant dense<0.000000e+00> : vector<1xf32>
    %22 = vector.multi_reduction <add>, %21, %cst_7 [1, 2] : vector<1x8x1xf32> to vector<1xf32>
    %23 = vector.shape_cast %22 : vector<1xf32> to vector<1x1x1xf32>
    %24 = vector.extract %23[0, 0, 0] : f32 from vector<1x1x1xf32>
    %cst_8 = arith.constant 1.250000e-01 : f32
    %25 = arith.mulf %24, %cst_8 : f32
    %26 = vector.broadcast %25 : f32 to vector<1x8x128xf32>
    %c0_9 = arith.constant 0 : index
    %c0_10 = arith.constant 0 : index
    %c0_11 = arith.constant 0 : index
    %27 = vector.load %arg3[%c0_9, %c0_10, %c0_11] : memref<1x8x128xf32, #tpu.memory_space<vmem>>, vector<1x8x128xf32>
    tpu.vector_store %arg3[%c0_9, %c0_10, %c0_11], %26 {strides = array<i32>} : memref<1x8x128xf32, #tpu.memory_space<vmem>>, vector<1x8x128xf32>,
    return
  }
  func.func @transform_0(%arg0: i32) -> (i32, i32) {
    %c0_i32 = arith.constant 0 : i32
    %c0_i32_0 = arith.constant 0 : i32
    return %arg0, %c0_i32 : i32, i32
  }
  func.func @transform_1(%arg0: i32) -> (i32, i32) {
    %c0_i32 = arith.constant 0 : i32
    %c0_i32_0 = arith.constant 0 : i32
    return %arg0, %c0_i32 : i32, i32
  }
  func.func @transform_2(%arg0: i32) -> (i32, i32, i32) {
    %c0_i32 = arith.constant 0 : i32
    %c0_i32_0 = arith.constant 0 : i32
    %c0_i32_1 = arith.constant 0 : i32
    return %arg0, %c0_i32, %c0_i32_0 : i32, i32, i32
  }
}

</mosaic_0001>

<llo_original>
// kernel: cross_entropy_label_smooth.1
$region0: #{cross_entropy_label_smooth.1}
  #allocation0 [shape = 'u32[]', space=smem, size = 0x4, offset = 0x4, fixed_abs, tag = 'smem constant byte address 0x4 - core index']
  #allocation1 [shape = 'u32[144,128]{1,0:T(1,128)}', space=vmem, size = 0x12000, scoped, tag = 'internal scratch']
  %s0 = inlined_call_operand.vmem [shape: f32[8,32], index: 0, kind: input, shape index: {}]
  %s1 = inlined_call_operand.vmem [shape: s32[8,1], index: 1, kind: input, shape index: {}]
  %s2 = inlined_call_operand.vmem [shape: f32[1,8,128], index: 2, kind: output, shape index: {}]
  %s3 = sld [smem:[#allocation0]]
  $region18: #{cross_entropy_label_smooth.1} parent=0
    _
  %s5 = ssub.s32 1, %s3
  %s6 = scalar_select 0, %s5, %s3
  // Predicated region
  $region2: #{cross_entropy_label_smooth.1} parent=0 // pred_check
    _
  $region3: #{cross_entropy_label_smooth.1} parent=0 // pred_check_branch
    %8 = sbr.rel (0) target = $region5
  $region4: #{cross_entropy_label_smooth.1} parent=0 // pred_region
    _
  $region5: #{cross_entropy_label_smooth.1} parent=0 // pred_fallthru
    _
  // Predicated region
  $region6: #{cross_entropy_label_smooth.1} parent=0 // pred_check
    _
  $region7: #{cross_entropy_label_smooth.1} parent=0 // pred_check_branch
    %10 = sbr.rel (0) target = $region9
  $region8: #{cross_entropy_label_smooth.1} parent=0 // pred_region
    _
  $region9: #{cross_entropy_label_smooth.1} parent=0 // pred_fallthru
    _
  %v11 = vld [vmem:[%s0] sm:$0xff]
  %vm12 = vcmask 261120
  %v13 = vsel %vm12, %v11, -inf
  %14 = vmax.xlane.f32.xlu0 %v13
  %v15 = vpop.xlane.xlu0 %14
  %v16 = vsub.f32 %v11, %v15
  %v17 = vmul.f32 %v16, 1.442695
  %v18 = vpow.pop %v17
  %v19 = vsel %vm12, %v18, 0.0
  %20 = vadd.xlane.f32.xlu0 %v19
  %v21 = vpop.xlane.xlu0 %20
  %v22 = vlog2.pop %v21
  %v23 = vmul.f32 %v22, 0.6931472
  %v24 = vlaneseq
  %v25 = vand.u32 %v24, 127
  %v26 = vld [vmem:[%s1] sm:$0xff]
  %27 = vset.pattern.permute.xlu0 0
  %28 = vperm.xlu0 %27, %v26
  %v29 = vpop.permute.xlu0 %28
  %vm30 = vcmp.eq.s32.totalorder %v25, %v29
  %v31 = vsel %vm30, 0.903125, 0.003125
  %v32 = vmul.f32 %v31, %v16
  %v33 = vsel %vm12, %v32, 0.0
  %34 = vadd.xlane.f32.xlu0 %v33
  %v35 = vpop.xlane.xlu0 %34
  %v36 = vsub.f32 %v23, %v35
  %vm37 = vcmask 7168
  %v38 = vsel %vm37, %v36, 0.0
  %39 = vadd.xlane.f32.xlu0 %v38
  %v40 = vpop.xlane.xlu0 %39
  %v41 = vrot.slane %v40, 4
  %v42 = vadd.f32 %v40, %v41
  %v43 = vrot.slane %v42, 2
  %v44 = vadd.f32 %v42, %v43
  %v45 = vrot.slane %v44, 1
  %v46 = vadd.f32 %v44, %v45
  %s47 = vtos %v46
  %s48 = smul.f32 %s47, 0.125
  %v49 = vstv %s48
  %50 = vst [vmem:[%s2] sm:$0xff] %v49
  // Predicated region
  $region10: #{cross_entropy_label_smooth.1} parent=0 // pred_check
    _
  $region11: #{cross_entropy_label_smooth.1} parent=0 // pred_check_branch
    %52 = sbr.rel (0) target = $region13
  $region12: #{cross_entropy_label_smooth.1} parent=0 // pred_region
    _
  $region13: #{cross_entropy_label_smooth.1} parent=0 // pred_fallthru
    _
  // Predicated region
  $region14: #{cross_entropy_label_smooth.1} parent=0 // pred_check
    _
  $region15: #{cross_entropy_label_smooth.1} parent=0 // pred_check_branch
    %54 = sbr.rel (0) target = $region17
  $region16: #{cross_entropy_label_smooth.1} parent=0 // pred_region
    _
  $region17: #{cross_entropy_label_smooth.1} parent=0 // pred_fallthru
    _

</llo_original>
